<compile_context>
chip_gen: v6e
topology: v6e:2x2x1
jax: 0.10.0
libtpu: 0.0.40
codegen_flags: <defaults>
</compile_context>

<pallas_src>
import jax
import jax.numpy as jnp
from jax.experimental import pallas as pl
from jax.experimental.pallas import tpu as pltpu


def _round_up(v, m):
    return (v + m - 1) // m * m


def _phi_kernel(x_ref, w1_ref, b1_ref, w2_ref, b2_ref, o_ref):
    # (TILE_N, d_in) @ (d_in, 128) on the MXU, f32 accumulation.
    h = jnp.dot(x_ref[...], w1_ref[...], preferred_element_type=jnp.float32)
    h = h + b1_ref[...]                      # bias broadcast (1, 128), f32
    h = h * jax.nn.sigmoid(h)                # SiLU in f32 (VPU + EUP)
    # Feed the second matmul at the MXU-native width of the weights.
    h = h.astype(w2_ref.dtype)
    out = jnp.dot(h, w2_ref[...], preferred_element_type=jnp.float32)
    out = out + b2_ref[...]                  # bias broadcast (1, 384), f32
    o_ref[...] = out.astype(o_ref.dtype)


def phi_forward(x, w1_t, b1, w2_t, b2, *, tile_n=1024,
                compute_dtype=jnp.float32, out_dtype=None):
    """x: (N, D_in); w1_t: (D_in, 128); b1: (1, 128); w2_t: (128, 384); b2: (1, 384).

    compute_dtype: dtype used for x / weights on the MXU (f32 or bf16);
    accumulation, bias add and SiLU are always f32. Output dtype defaults to
    the input dtype.
    """
    n, d_in = x.shape
    hidden = w1_t.shape[1]
    d_out = w2_t.shape[1]
    if out_dtype is None:
        out_dtype = x.dtype

    # Row tile: multiple of the vreg sublane packing (8 for f32, 16 for bf16),
    # capped at tile_n (default 1024 -> well under the scoped VMEM limit on
    # v5e/v6e/v7x even with double buffering, while keeping DMA steps large).
    row_mult = 16 if jnp.dtype(compute_dtype).itemsize < 4 else 8
    tile_n = min(tile_n, _round_up(n, row_mult))
    tile_n = _round_up(tile_n, row_mult)
    n_pad = _round_up(n, tile_n)

    xc = x.astype(compute_dtype)
    if n_pad != n:
        # Zero rows only produce garbage in padded output rows, sliced off below.
        xc = jnp.pad(xc, ((0, n_pad - n), (0, 0)))
    w1c = w1_t.astype(compute_dtype)
    w2c = w2_t.astype(compute_dtype)
    b1f = b1.astype(jnp.float32)
    b2f = b2.astype(jnp.float32)

    grid = (n_pad // tile_n,)

    in_item = jnp.dtype(compute_dtype).itemsize
    cost = pl.CostEstimate(
        flops=2 * n_pad * (d_in * hidden + hidden * d_out),
        transcendentals=n_pad * hidden,  # sigmoid in SiLU
        bytes_accessed=(n_pad * d_in * in_item
                        + (d_in * hidden + hidden * d_out) * in_item
                        + (hidden + d_out) * 4
                        + n_pad * d_out * jnp.dtype(out_dtype).itemsize),
    )

    out = pl.pallas_call(
        _phi_kernel,
        out_shape=jax.ShapeDtypeStruct((n_pad, d_out), out_dtype),
        grid=grid,
        in_specs=[
            # Row-tiled activations: double-buffered across grid steps.
            pl.BlockSpec((tile_n, d_in), lambda i: (i, 0)),
            # Weights / biases: constant block index -> VMEM-resident.
            pl.BlockSpec((d_in, hidden), lambda i: (0, 0)),
            pl.BlockSpec((1, hidden), lambda i: (0, 0)),
            pl.BlockSpec((hidden, d_out), lambda i: (0, 0)),
            pl.BlockSpec((1, d_out), lambda i: (0, 0)),
        ],
        out_specs=pl.BlockSpec((tile_n, d_out), lambda i: (i, 0)),
        compiler_params=pltpu.CompilerParams(
            dimension_semantics=("parallel",),  # rows independent -> megacore on v7x
        ),
        cost_estimate=cost,
    )(xc, w1c, b1f, w2c, b2f)

    return out[:n] if n_pad != n else out


def init_params(key, input_size, hidden=128, output=384, dtype=jnp.float32):
    """Deterministic synthetic parameters (PyTorch Linear shapes: W is (out, in))."""
    k1, k2, k3, k4 = jax.random.split(key, 4)
    bound1 = 1.0 / (input_size ** 0.5)
    bound2 = 1.0 / (hidden ** 0.5)
    w1 = jax.random.uniform(k1, (hidden, input_size), dtype, -bound1, bound1)
    b1 = jax.random.uniform(k2, (hidden,), dtype, -bound1, bound1)
    w2 = jax.random.uniform(k3, (output, hidden), dtype, -bound2, bound2)
    b2 = jax.random.uniform(k4, (output,), dtype, -bound2, bound2)
    return w1, b1, w2, b2


def reference_forward(x, w1, b1, w2, b2):
    """Plain-JAX reference matching nn.Linear semantics: y = x @ W.T + b."""
    h = x @ w1.T + b1
    h = h * jax.nn.sigmoid(h)  # SiLU
    return h @ w2.T + b2


if __name__ == "__main__":
    key = jax.random.PRNGKey(0)
    kx, kp = jax.random.split(key)

    input_size = 32   # e.g. RBF expansion size in PaiNN
    n = 8             # small number of edges/nodes (rows)

    x = jax.random.normal(kx, (n, input_size), jnp.float32)
    w1, b1, w2, b2 = init_params(kp, input_size)
    ref = reference_forward(x, w1, b1, w2, b2)

    # f32 path (exact-semantics check, tight tolerance).
    out_f32 = phi_forward(x, w1.T, b1[None, :], w2.T, b2[None, :],
                          compute_dtype=jnp.float32, out_dtype=jnp.float32)
    out_f32 = jax.block_until_ready(out_f32)
    assert out_f32.shape == (n, 384)
    assert jnp.allclose(out_f32, ref, atol=1e-4, rtol=1e-4), "f32 mismatch vs reference"

    # bf16-MXU path (perf configuration: bf16 x/weights, f32 accum, f32 out).
    out_bf16 = phi_forward(x, w1.T, b1[None, :], w2.T, b2[None, :],
                           compute_dtype=jnp.bfloat16, out_dtype=jnp.float32)
    out_bf16 = jax.block_until_ready(out_bf16)
    assert out_bf16.shape == (n, 384)
    assert jnp.allclose(out_bf16, ref, atol=5e-2, rtol=5e-2), "bf16 mismatch vs reference"

    print("KERNEL_OK")
</pallas_src>

<mosaic_0001>
module attributes {stable_mosaic.version = 11 : i64} {
  func.func @_phi_kernel(%arg0: i32, %arg1: memref<8x32xf32, #tpu.memory_space<vmem>>, %arg2: memref<32x128xf32, #tpu.memory_space<vmem>>, %arg3: memref<1x128xf32, #tpu.memory_space<vmem>>, %arg4: memref<128x384xf32, #tpu.memory_space<vmem>>, %arg5: memref<1x384xf32, #tpu.memory_space<vmem>>, %arg6: memref<8x384xf32, #tpu.memory_space<vmem>>) attributes {dimension_semantics = [#tpu.dimension_semantics<parallel>], iteration_bounds = array<i64: 1>, scalar_prefetch = 0 : i64, scratch_operands = 0 : i64, tpu.core_type = #tpu.core_type<tc>, window_params = [{transform_indices = @transform_0, window_bounds = array<i64: 8, 32>}, {pipeline_mode = #tpu.pipeline_mode<synchronous>, transform_indices = @transform_1, window_bounds = array<i64: 32, 128>}, {pipeline_mode = #tpu.pipeline_mode<synchronous>, transform_indices = @transform_2, window_bounds = array<i64: 1, 128>}, {pipeline_mode = #tpu.pipeline_mode<synchronous>, transform_indices = @transform_3, window_bounds = array<i64: 128, 384>}, {pipeline_mode = #tpu.pipeline_mode<synchronous>, transform_indices = @transform_4, window_bounds = array<i64: 1, 384>}, {transform_indices = @transform_5, window_bounds = array<i64: 8, 384>}]} {
    %c0 = arith.constant 0 : index
    %c0_0 = arith.constant 0 : index
    %0 = vector.load %arg1[%c0, %c0_0] : memref<8x32xf32, #tpu.memory_space<vmem>>, vector<8x32xf32>
    %c0_1 = arith.constant 0 : index
    %c0_2 = arith.constant 0 : index
    %1 = vector.load %arg2[%c0_1, %c0_2] : memref<32x128xf32, #tpu.memory_space<vmem>>, vector<32x128xf32>
    %cst = arith.constant dense<0.000000e+00> : vector<8x128xf32>
    %2 = tpu.matmul %0, %1, %cst {dimension_numbers = #tpu.dot_dimension_numbers<[1], [0], [0], [1], [0, 0, 1, 1], [], []>} : vector<8x32xf32>, vector<32x128xf32>, vector<8x128xf32> -> vector<8x128xf32>
    %c0_3 = arith.constant 0 : index
    %c0_4 = arith.constant 0 : index
    %3 = vector.load %arg3[%c0_3, %c0_4] : memref<1x128xf32, #tpu.memory_space<vmem>>, vector<1x128xf32>
    %4 = vector.broadcast %3 : vector<1x128xf32> to vector<8x128xf32>
    %5 = arith.addf %2, %4 : vector<8x128xf32>
    %6 = arith.negf %5 : vector<8x128xf32>
    %7 = math.exp %6 : vector<8x128xf32>
    %cst_5 = arith.constant 1.000000e+00 : f32
    %8 = vector.broadcast %cst_5 : f32 to vector<8x128xf32>
    %9 = arith.addf %8, %7 : vector<8x128xf32>
    %10 = arith.divf %8, %9 : vector<8x128xf32>
    %11 = arith.mulf %5, %10 : vector<8x128xf32>
    %c0_6 = arith.constant 0 : index
    %c0_7 = arith.constant 0 : index
    %12 = vector.load %arg4[%c0_6, %c0_7] : memref<128x384xf32, #tpu.memory_space<vmem>>, vector<128x384xf32>
    %cst_8 = arith.constant dense<0.000000e+00> : vector<8x384xf32>
    %13 = tpu.matmul %11, %12, %cst_8 {dimension_numbers = #tpu.dot_dimension_numbers<[1], [0], [0], [1], [0, 0, 1, 1], [], []>} : vector<8x128xf32>, vector<128x384xf32>, vector<8x384xf32> -> vector<8x384xf32>
    %c0_9 = arith.constant 0 : index
    %c0_10 = arith.constant 0 : index
    %14 = vector.load %arg5[%c0_9, %c0_10] : memref<1x384xf32, #tpu.memory_space<vmem>>, vector<1x384xf32>
    %15 = vector.broadcast %14 : vector<1x384xf32> to vector<8x384xf32>
    %16 = arith.addf %13, %15 : vector<8x384xf32>
    %c0_11 = arith.constant 0 : index
    %c0_12 = arith.constant 0 : index
    %17 = vector.load %arg6[%c0_11, %c0_12] : memref<8x384xf32, #tpu.memory_space<vmem>>, vector<8x384xf32>
    tpu.vector_store %arg6[%c0_11, %c0_12], %16 {strides = array<i32>} : memref<8x384xf32, #tpu.memory_space<vmem>>, vector<8x384xf32>,
    return
  }
  func.func @transform_0(%arg0: i32) -> (i32, i32) {
    %c0_i32 = arith.constant 0 : i32
    %c0_i32_0 = arith.constant 0 : i32
    return %arg0, %c0_i32 : i32, i32
  }
  func.func @transform_1(%arg0: i32) -> (i32, i32) {
    %c0_i32 = arith.constant 0 : i32
    %c0_i32_0 = arith.constant 0 : i32
    %c0_i32_1 = arith.constant 0 : i32
    return %c0_i32, %c0_i32_0 : i32, i32
  }
  func.func @transform_2(%arg0: i32) -> (i32, i32) {
    %c0_i32 = arith.constant 0 : i32
    %c0_i32_0 = arith.constant 0 : i32
    %c0_i32_1 = arith.constant 0 : i32
    return %c0_i32, %c0_i32_0 : i32, i32
  }
  func.func @transform_3(%arg0: i32) -> (i32, i32) {
    %c0_i32 = arith.constant 0 : i32
    %c0_i32_0 = arith.constant 0 : i32
    %c0_i32_1 = arith.constant 0 : i32
    return %c0_i32, %c0_i32_0 : i32, i32
  }
  func.func @transform_4(%arg0: i32) -> (i32, i32) {
    %c0_i32 = arith.constant 0 : i32
    %c0_i32_0 = arith.constant 0 : i32
    %c0_i32_1 = arith.constant 0 : i32
    return %c0_i32, %c0_i32_0 : i32, i32
  }
  func.func @transform_5(%arg0: i32) -> (i32, i32) {
    %c0_i32 = arith.constant 0 : i32
    %c0_i32_0 = arith.constant 0 : i32
    return %arg0, %c0_i32 : i32, i32
  }
}

</mosaic_0001>

<llo_original>
// kernel: tpu_custom_call.1
$region0: #{tpu_custom_call.1}
  #allocation0 [shape = 'u32[]', space=smem, size = 0x4, offset = 0x4, fixed_abs, tag = 'smem constant byte address 0x4 - core index']
  #allocation1 [shape = 'u32[144,128]{1,0:T(1,128)}', space=vmem, size = 0x12000, scoped, tag = 'internal scratch']
  %s0 = inlined_call_operand.hbm [shape: f32[8,32], index: 0, kind: input, shape index: {}]
  %s1 = inlined_call_operand.hbm [shape: f32[32,128], index: 1, kind: input, shape index: {}]
  %s2 = inlined_call_operand.vmem [shape: f32[1,128], index: 2, kind: input, shape index: {}]
  %s3 = inlined_call_operand.hbm [shape: f32[128,384], index: 3, kind: input, shape index: {}]
  %s4 = inlined_call_operand.vmem [shape: f32[1,384], index: 4, kind: input, shape index: {}]
  %s5 = inlined_call_operand.hbm [shape: f32[8,384], index: 5, kind: output, shape index: {}]
  %s6 = sld [smem:[#allocation0]]
  $region42: #{tpu_custom_call.1} parent=0
    _
  %s8 = ssub.s32 1, %s6
  %s9 = scalar_select 0, %s8, %s6
  $region1: #{tpu_custom_call.1} parent=0
    #allocation2 [shape = 'u8[4096]{0}', space=vmem, size = 0x1000, scoped, tag = 'input window, operand 0, single buffered']
    #allocation3 [shape = 's32[1]{0}', space=sflag, size = 0x4, scoped, tag = 'scoped memory for tpu_custom_call.1']
    #allocation4 [shape = 's32[1]{0}', space=sflag, size = 0x4, scoped, tag = 'scoped memory for tpu_custom_call.1']
    #allocation5 [shape = 'u8[16384]{0}', space=vmem, size = 0x4000, scoped, tag = 'input window, operand 1, single buffered']
    #allocation6 [shape = 's32[1]{0}', space=sflag, size = 0x4, scoped, tag = 'scoped memory for tpu_custom_call.1']
    #allocation7 [shape = 'u8[196608]{0}', space=vmem, size = 0x30000, scoped, tag = 'input window, operand 3, single buffered']
    #allocation8 [shape = 'u8[12288]{0}', space=vmem, size = 0x3000, scoped, tag = 'output window, operand 0, single buffered']
    %10 = vsyncpa [#allocation3], 0
    %11 = vsyncpa [#allocation6], 0
    %12 = vsyncpa [#allocation4], 0
    // Predicated region
    $region2: #{tpu_custom_call.1} parent=1 // pred_check
      _
    $region3: #{tpu_custom_call.1} parent=1 // pred_check_branch
      %14 = sbr.rel (0) target = $region5
    $region4: #{tpu_custom_call.1} parent=1 // pred_region
      %s16 = ssub.s32 128, 128
      %17 = vsyncadd [#allocation3], %s16
      %s19 = sshll.u32 [#allocation2], 4
      %s20 = int_to_ptr.vmem [resolvable:$true] %s19
      %22 = dma.hbm_to_vmem [thread:$0]  %s0, 128, %s20, [#allocation3]
    $region5: #{tpu_custom_call.1} parent=1 // pred_fallthru
      _
    // Predicated region
    $region6: #{tpu_custom_call.1} parent=1 // pred_check
      _
    $region7: #{tpu_custom_call.1} parent=1 // pred_check_branch
      %24 = sbr.rel (0) target = $region9
    $region8: #{tpu_custom_call.1} parent=1 // pred_region
      %s26 = ssub.s32 512, 512
      %27 = vsyncadd [#allocation6], %s26
      %s28 = sshll.u32 [#allocation5], 4
      %s29 = int_to_ptr.vmem [resolvable:$true] %s28
      %34 = dma.hbm_to_vmem [thread:$0]  %s1, 512, %s29, [#allocation6], 128, 128, 8
    $region9: #{tpu_custom_call.1} parent=1 // pred_fallthru
      _
    // Predicated region
    $region10: #{tpu_custom_call.1} parent=1 // pred_check
      _
    $region11: #{tpu_custom_call.1} parent=1 // pred_check_branch
      %36 = sbr.rel (0) target = $region13
    $region12: #{tpu_custom_call.1} parent=1 // pred_region
      _
    $region13: #{tpu_custom_call.1} parent=1 // pred_fallthru
      _
    // Predicated region
    $region14: #{tpu_custom_call.1} parent=1 // pred_check
      _
    $region15: #{tpu_custom_call.1} parent=1 // pred_check_branch
      %38 = sbr.rel (0) target = $region17
    $region16: #{tpu_custom_call.1} parent=1 // pred_region
      %s40 = ssub.s32 6144, 6144
      %41 = vsyncadd [#allocation6], %s40
      %s42 = sshll.u32 [#allocation7], 4
      %s43 = int_to_ptr.vmem [resolvable:$true] %s42
      %48 = dma.hbm_to_vmem [thread:$0]  %s3, 6144, %s43, [#allocation6], 384, 384, 24
    $region17: #{tpu_custom_call.1} parent=1 // pred_fallthru
      _
    // Predicated region
    $region18: #{tpu_custom_call.1} parent=1 // pred_check
      _
    $region19: #{tpu_custom_call.1} parent=1 // pred_check_branch
      %50 = sbr.rel (0) target = $region21
    $region20: #{tpu_custom_call.1} parent=1 // pred_region
      _
    $region21: #{tpu_custom_call.1} parent=1 // pred_fallthru
      _
    // Predicated region
    $region22: #{tpu_custom_call.1} parent=1 // pred_check
      _
    $region23: #{tpu_custom_call.1} parent=1 // pred_check_branch
      %52 = sbr.rel (0) target = $region25
    $region24: #{tpu_custom_call.1} parent=1 // pred_region
      %53 = dma.done [#allocation3], 128
    $region25: #{tpu_custom_call.1} parent=1 // pred_fallthru
      _
    // Predicated region
    $region26: #{tpu_custom_call.1} parent=1 // pred_check
      _
    $region27: #{tpu_custom_call.1} parent=1 // pred_check_branch
      %55 = sbr.rel (0) target = $region29
    $region28: #{tpu_custom_call.1} parent=1 // pred_region
      %56 = dma.done [#allocation6], 512
    $region29: #{tpu_custom_call.1} parent=1 // pred_fallthru
      _
    // Predicated region
    $region30: #{tpu_custom_call.1} parent=1 // pred_check
      _
    $region31: #{tpu_custom_call.1} parent=1 // pred_check_branch
      %58 = sbr.rel (0) target = $region33
    $region32: #{tpu_custom_call.1} parent=1 // pred_region
      %59 = dma.done [#allocation6], 6144
    $region33: #{tpu_custom_call.1} parent=1 // pred_fallthru
      _
    %v60 = vld [vmem:[#allocation2] sm:$0xff]
    %v61 = vld [vmem:[#allocation5] sm:$0xff]
    %v62 = vld [vmem:[#allocation5 + $0x8] sm:$0xff]
    %v63 = vld [vmem:[#allocation5 + $0x10] sm:$0xff]
    %v64 = vld [vmem:[#allocation5 + $0x18] sm:$0xff]
    %v65 = vld [vmem:[%s2] sm:$0x1]
    %v67 = vlaneseq
    %v68 = vshrl.u32 %v67, 7
    %v69 = vsub.s32 0, %v68
    %v70 = vrot.slane %v65, %v69
    %vm72 = vcmask 261120
    %v74 = vsel %vm72, %v60, 0
    %76 = vmatprep.subr.mxu0 0.0
    %77 = vmatpush1.msra.mxu0 0.0
    %78 = vmatprep.subr.mxu0 0.0
    %79 = vmatpush1.msra.mxu0 0.0
    %80 = vmatprep.subr.mxu0 0.0
    %81 = vmatpush1.msra.mxu0 0.0
    %82 = vmatprep.subr.mxu0 0.0
    %83 = vmatpush1.msra.mxu0 0.0
    %84 = vmatprep.subr.mxu0 0.0
    %85 = vmatpush1.msra.mxu0 0.0
    %86 = vmatprep.subr.mxu0 0.0
    %87 = vmatpush1.msra.mxu0 0.0
    %88 = vmatprep.subr.mxu0 0.0
    %89 = vmatpush1.msra.mxu0 0.0
    %90 = vmatprep.subr.mxu0 0.0
    %91 = vmatpush1.msra.mxu0 0.0
    %92 = vmatprep.subr.mxu0 0.0
    %93 = vmatpush1.msra.mxu0 0.0
    %94 = vmatprep.subr.mxu0 0.0
    %95 = vmatpush1.msra.mxu0 0.0
    %96 = vmatprep.subr.mxu0 0.0
    %97 = vmatpush1.msra.mxu0 0.0
    %98 = vmatprep.subr.mxu0 0.0
    %99 = vmatpush1.msra.mxu0 0.0
    %100 = vmatprep.subr.mxu0 0.0
    %101 = vmatpush1.msra.mxu0 %v64
    %102 = vmatprep.subr.mxu0 0.0
    %103 = vmatpush1.msra.mxu0 %v63
    %104 = vmatprep.subr.mxu0 0.0
    %105 = vmatpush1.msra.mxu0 %v62
    %106 = vmatprep.subr.mxu0 0.0
    %107 = vmatpush1.msra.mxu0 %v61
    %108 = vmatprep.subr.mxu0 0.0
    %109 = vmatpush2.msra.mxu0 0.0
    %110 = vmatprep.subr.mxu0 0.0
    %111 = vmatpush2.msra.mxu0 0.0
    %112 = vmatprep.subr.mxu0 0.0
    %113 = vmatpush2.msra.mxu0 0.0
    %114 = vmatprep.subr.mxu0 0.0
    %115 = vmatpush2.msra.mxu0 0.0
    %116 = vmatprep.subr.mxu0 0.0
    %117 = vmatpush2.msra.mxu0 0.0
    %118 = vmatprep.subr.mxu0 0.0
    %119 = vmatpush2.msra.mxu0 0.0
    %120 = vmatprep.subr.mxu0 0.0
    %121 = vmatpush2.msra.mxu0 0.0
    %122 = vmatprep.subr.mxu0 0.0
    %123 = vmatpush2.msra.mxu0 0.0
    %124 = vmatprep.subr.mxu0 0.0
    %125 = vmatpush2.msra.mxu0 0.0
    %126 = vmatprep.subr.mxu0 0.0
    %127 = vmatpush2.msra.mxu0 0.0
    %128 = vmatprep.subr.mxu0 0.0
    %129 = vmatpush2.msra.mxu0 0.0
    %130 = vmatprep.subr.mxu0 0.0
    %131 = vmatpush2.msra.mxu0 0.0
    %132 = vmatprep.subr.mxu0 0.0
    %133 = vmatpush2.msra.mxu0 0.0
    %134 = vmatprep.subr.mxu0 0.0
    %135 = vmatpush2.msra.mxu0 0.0
    %136 = vmatprep.subr.mxu0 0.0
    %137 = vmatpush2.msra.mxu0 0.0
    %138 = vmatprep.subr.mxu0 0.0
    %139 = vmatpush2.msra.mxu0 0.0
    %140 = vmatprep.mubr.f32.mxu0 0.0
    %141 = vmatmul.mubr.f32.gmra.mxu0 %v74
    %v142 = vpop.f32.mrf.mxu0
    %v143 = vadd.f32 %v70, %v142
    %v144 = vpop.f32.mrf.mxu0
    %145 = vdwg.mxu0
    %v146 = vxor.u32 %v143, 2147483648
    %v147 = vmul.f32 %v146, 1.442695
    %v148 = vpow.pop %v147
    %v149 = vadd.f32 %v148, 1.0
    %v150 = vrcp.pop %v149
    %v151 = vmul.f32 1.0, %v150
    %v152 = vmul.f32 %v143, %v151
    %v153 = vld [vmem:[#allocation7] sm:$0xff]
    %v154 = vld [vmem:[#allocation7 + $0x8] sm:$0xff]
    %v155 = vld [vmem:[#allocation7 + $0x10] sm:$0xff]
    %v156 = vld [vmem:[#allocation7 + $0x18] sm:$0xff]
    %v157 = vld [vmem:[#allocation7 + $0x20] sm:$0xff]
    %v158 = vld [vmem:[#allocation7 + $0x28] sm:$0xff]
    %v159 = vld [vmem:[#allocation7 + $0x30] sm:$0xff]
    %v160 = vld [vmem:[#allocation7 + $0x38] sm:$0xff]
    %v161 = vld [vmem:[#allocation7 + $0x40] sm:$0xff]
    %v162 = vld [vmem:[#allocation7 + $0x48] sm:$0xff]
    %v163 = vld [vmem:[#allocation7 + $0x50] sm:$0xff]
    %v164 = vld [vmem:[#allocation7 + $0x58] sm:$0xff]
    %v165 = vld [vmem:[#allocation7 + $0x60] sm:$0xff]
    %v166 = vld [vmem:[#allocation7 + $0x68] sm:$0xff]
    %v167 = vld [vmem:[#allocation7 + $0x70] sm:$0xff]
    %v168 = vld [vmem:[#allocation7 + $0x78] sm:$0xff]
    %v169 = vld [vmem:[#allocation7 + $0x80] sm:$0xff]
    %v170 = vld [vmem:[#allocation7 + $0x88] sm:$0xff]
    %v171 = vld [vmem:[#allocation7 + $0x90] sm:$0xff]
    %v172 = vld [vmem:[#allocation7 + $0x98] sm:$0xff]
    %v173 = vld [vmem:[#allocation7 + $0xa0] sm:$0xff]
    %v174 = vld [vmem:[#allocation7 + $0xa8] sm:$0xff]
    %v175 = vld [vmem:[#allocation7 + $0xb0] sm:$0xff]
    %v176 = vld [vmem:[#allocation7 + $0xb8] sm:$0xff]
    %v177 = vld [vmem:[#allocation7 + $0xc0] sm:$0xff]
    %v178 = vld [vmem:[#allocation7 + $0xc8] sm:$0xff]
    %v179 = vld [vmem:[#allocation7 + $0xd0] sm:$0xff]
    %v180 = vld [vmem:[#allocation7 + $0xd8] sm:$0xff]
    %v181 = vld [vmem:[#allocation7 + $0xe0] sm:$0xff]
    %v182 = vld [vmem:[#allocation7 + $0xe8] sm:$0xff]
    %v183 = vld [vmem:[#allocation7 + $0xf0] sm:$0xff]
    %v184 = vld [vmem:[#allocation7 + $0xf8] sm:$0xff]
    %v185 = vld [vmem:[#allocation7 + $0x100] sm:$0xff]
    %v186 = vld [vmem:[#allocation7 + $0x108] sm:$0xff]
    %v187 = vld [vmem:[#allocation7 + $0x110] sm:$0xff]
    %v188 = vld [vmem:[#allocation7 + $0x118] sm:$0xff]
    %v189 = vld [vmem:[#allocation7 + $0x120] sm:$0xff]
    %v190 = vld [vmem:[#allocation7 + $0x128] sm:$0xff]
    %v191 = vld [vmem:[#allocation7 + $0x130] sm:$0xff]
    %v192 = vld [vmem:[#allocation7 + $0x138] sm:$0xff]
    %v193 = vld [vmem:[#allocation7 + $0x140] sm:$0xff]
    %v194 = vld [vmem:[#allocation7 + $0x148] sm:$0xff]
    %v195 = vld [vmem:[#allocation7 + $0x150] sm:$0xff]
    %v196 = vld [vmem:[#allocation7 + $0x158] sm:$0xff]
    %v197 = vld [vmem:[#allocation7 + $0x160] sm:$0xff]
    %v198 = vld [vmem:[#allocation7 + $0x168] sm:$0xff]
    %v199 = vld [vmem:[#allocation7 + $0x170] sm:$0xff]
    %v200 = vld [vmem:[#allocation7 + $0x178] sm:$0xff]
    %v201 = vld [vmem:[%s4] sm:$0x7]
    %v203 = vlaneseq
    %v204 = vshrl.u32 %v203, 7
    %v205 = vsub.s32 0, %v204
    %v206 = vrot.slane %v201, %v205
    %v207 = vlaneseq
    %v208 = vshrl.u32 %v207, 7
    %v209 = vsub.s32 1, %v208
    %v210 = vrot.slane %v201, %v209
    %v211 = vlaneseq
    %v212 = vshrl.u32 %v211, 7
    %v213 = vsub.s32 2, %v212
    %v214 = vrot.slane %v201, %v213
    %218 = vmatprep.subr.mxu0 %v199
    %219 = vmatpush1.msra.mxu0 %v198
    %220 = vmatprep.subr.mxu0 %v196
    %221 = vmatpush1.msra.mxu0 %v195
    %222 = vmatprep.subr.mxu0 %v193
    %223 = vmatpush1.msra.mxu0 %v192
    %224 = vmatprep.subr.mxu0 %v190
    %225 = vmatpush1.msra.mxu0 %v189
    %226 = vmatprep.subr.mxu0 %v187
    %227 = vmatpush1.msra.mxu0 %v186
    %228 = vmatprep.subr.mxu0 %v184
    %229 = vmatpush1.msra.mxu0 %v183
    %230 = vmatprep.subr.mxu0 %v181
    %231 = vmatpush1.msra.mxu0 %v180
    %232 = vmatprep.subr.mxu0 %v178
    %233 = vmatpush1.msra.mxu0 %v177
    %234 = vmatprep.subr.mxu0 %v175
    %235 = vmatpush1.msra.mxu0 %v174
    %236 = vmatprep.subr.mxu0 %v172
    %237 = vmatpush1.msra.mxu0 %v171
    %238 = vmatprep.subr.mxu0 %v169
    %239 = vmatpush1.msra.mxu0 %v168
    %240 = vmatprep.subr.mxu0 %v166
    %241 = vmatpush1.msra.mxu0 %v165
    %242 = vmatprep.subr.mxu0 %v163
    %243 = vmatpush1.msra.mxu0 %v162
    %244 = vmatprep.subr.mxu0 %v160
    %245 = vmatpush1.msra.mxu0 %v159
    %246 = vmatprep.subr.mxu0 %v157
    %247 = vmatpush1.msra.mxu0 %v156
    %248 = vmatprep.subr.mxu0 %v154
    %249 = vmatpush1.msra.mxu0 %v153
    %250 = vmatprep.subr.mxu0 0.0
    %251 = vmatpush2.msra.mxu0 0.0
    %252 = vmatprep.subr.mxu0 0.0
    %253 = vmatpush2.msra.mxu0 0.0
    %254 = vmatprep.subr.mxu0 0.0
    %255 = vmatpush2.msra.mxu0 0.0
    %256 = vmatprep.subr.mxu0 0.0
    %257 = vmatpush2.msra.mxu0 0.0
    %258 = vmatprep.subr.mxu0 0.0
    %259 = vmatpush2.msra.mxu0 0.0
    %260 = vmatprep.subr.mxu0 0.0
    %261 = vmatpush2.msra.mxu0 0.0
    %262 = vmatprep.subr.mxu0 0.0
    %263 = vmatpush2.msra.mxu0 0.0
    %264 = vmatprep.subr.mxu0 0.0
    %265 = vmatpush2.msra.mxu0 0.0
    %266 = vmatprep.subr.mxu0 0.0
    %267 = vmatpush2.msra.mxu0 0.0
    %268 = vmatprep.subr.mxu0 0.0
    %269 = vmatpush2.msra.mxu0 0.0
    %270 = vmatprep.subr.mxu0 0.0
    %271 = vmatpush2.msra.mxu0 0.0
    %272 = vmatprep.subr.mxu0 0.0
    %273 = vmatpush2.msra.mxu0 0.0
    %274 = vmatprep.subr.mxu0 0.0
    %275 = vmatpush2.msra.mxu0 0.0
    %276 = vmatprep.subr.mxu0 0.0
    %277 = vmatpush2.msra.mxu0 0.0
    %278 = vmatprep.subr.mxu0 0.0
    %279 = vmatpush2.msra.mxu0 0.0
    %280 = vmatprep.subr.mxu0 0.0
    %281 = vmatpush2.msra.mxu0 0.0
    %282 = vmatprep.mubr.f32.mxu0 0.0
    %283 = vmatmul.mubr.f32.gmra.mxu0 %v152
    %v284 = vpop.f32.mrf.mxu0
    %v285 = vadd.f32 %v206, %v284
    %v286 = vpop.f32.mrf.mxu0
    %v287 = vadd.f32 %v210, %v286
    %288 = vdwg.mxu0
    %289 = vmatprep.subr.mxu0 0.0
    %290 = vmatpush1.msra.mxu0 %v200
    %291 = vmatprep.subr.mxu0 0.0
    %292 = vmatpush1.msra.mxu0 %v197
    %293 = vmatprep.subr.mxu0 0.0
    %294 = vmatpush1.msra.mxu0 %v194
    %295 = vmatprep.subr.mxu0 0.0
    %296 = vmatpush1.msra.mxu0 %v191
    %297 = vmatprep.subr.mxu0 0.0
    %298 = vmatpush1.msra.mxu0 %v188
    %299 = vmatprep.subr.mxu0 0.0
    %300 = vmatpush1.msra.mxu0 %v185
    %301 = vmatprep.subr.mxu0 0.0
    %302 = vmatpush1.msra.mxu0 %v182
    %303 = vmatprep.subr.mxu0 0.0
    %304 = vmatpush1.msra.mxu0 %v179
    %305 = vmatprep.subr.mxu0 0.0
    %306 = vmatpush1.msra.mxu0 %v176
    %307 = vmatprep.subr.mxu0 0.0
    %308 = vmatpush1.msra.mxu0 %v173
    %309 = vmatprep.subr.mxu0 0.0
    %310 = vmatpush1.msra.mxu0 %v170
    %311 = vmatprep.subr.mxu0 0.0
    %312 = vmatpush1.msra.mxu0 %v167
    %313 = vmatprep.subr.mxu0 0.0
    %314 = vmatpush1.msra.mxu0 %v164
    %315 = vmatprep.subr.mxu0 0.0
    %316 = vmatpush1.msra.mxu0 %v161
    %317 = vmatprep.subr.mxu0 0.0
    %318 = vmatpush1.msra.mxu0 %v158
    %319 = vmatprep.subr.mxu0 0.0
    %320 = vmatpush1.msra.mxu0 %v155
    %321 = vmatprep.subr.mxu0 0.0
    %322 = vmatpush2.msra.mxu0 0.0
    %323 = vmatprep.subr.mxu0 0.0
    %324 = vmatpush2.msra.mxu0 0.0
    %325 = vmatprep.subr.mxu0 0.0
    %326 = vmatpush2.msra.mxu0 0.0
    %327 = vmatprep.subr.mxu0 0.0
    %328 = vmatpush2.msra.mxu0 0.0
    %329 = vmatprep.subr.mxu0 0.0
    %330 = vmatpush2.msra.mxu0 0.0
    %331 = vmatprep.subr.mxu0 0.0
    %332 = vmatpush2.msra.mxu0 0.0
    %333 = vmatprep.subr.mxu0 0.0
    %334 = vmatpush2.msra.mxu0 0.0
    %335 = vmatprep.subr.mxu0 0.0
    %336 = vmatpush2.msra.mxu0 0.0
    %337 = vmatprep.subr.mxu0 0.0
    %338 = vmatpush2.msra.mxu0 0.0
    %339 = vmatprep.subr.mxu0 0.0
    %340 = vmatpush2.msra.mxu0 0.0
    %341 = vmatprep.subr.mxu0 0.0
    %342 = vmatpush2.msra.mxu0 0.0
    %343 = vmatprep.subr.mxu0 0.0
    %344 = vmatpush2.msra.mxu0 0.0
    %345 = vmatprep.subr.mxu0 0.0
    %346 = vmatpush2.msra.mxu0 0.0
    %347 = vmatprep.subr.mxu0 0.0
    %348 = vmatpush2.msra.mxu0 0.0
    %349 = vmatprep.subr.mxu0 0.0
    %350 = vmatpush2.msra.mxu0 0.0
    %351 = vmatprep.subr.mxu0 0.0
    %352 = vmatpush2.msra.mxu0 0.0
    %353 = vmatprep.mubr.f32.mxu0 0.0
    %354 = vmatmul.mubr.f32.gmra.mxu0 %v152
    %v355 = vpop.f32.mrf.mxu0
    %v356 = vadd.f32 %v214, %v355
    %v357 = vpop.f32.mrf.mxu0
    %358 = vdwg.mxu0
    %359 = vst [vmem:[#allocation8] sm:$0xff] %v285
    %360 = vst [vmem:[#allocation8 + $0x8] sm:$0xff] %v287
    %361 = vst [vmem:[#allocation8 + $0x10] sm:$0xff] %v356
    // Predicated region
    $region34: #{tpu_custom_call.1} parent=1 // pred_check
      _
    $region35: #{tpu_custom_call.1} parent=1 // pred_check_branch
      %363 = sbr.rel (0) target = $region37
    $region36: #{tpu_custom_call.1} parent=1 // pred_region
      %s365 = ssub.s32 384, 384
      %366 = vsyncadd [#allocation4], %s365
      %s368 = sshll.u32 [#allocation8], 4
      %s369 = int_to_ptr.vmem [resolvable:$true] %s368
      %371 = dma.vmem_to_hbm [thread:$0]  %s369, 384, %s5, [#allocation4]
    $region37: #{tpu_custom_call.1} parent=1 // pred_fallthru
      _
    // Predicated region
    $region38: #{tpu_custom_call.1} parent=1 // pred_check
      _
    $region39: #{tpu_custom_call.1} parent=1 // pred_check_branch
      %373 = sbr.rel (0) target = $region41
    $region40: #{tpu_custom_call.1} parent=1 // pred_region
      %374 = dma.done [#allocation4], 384
    $region41: #{tpu_custom_call.1} parent=1 // pred_fallthru
      _
    %375 = vsyncpa [#allocation3], 1
    %376 = vsyncpa [#allocation6], 1
    %377 = vsyncpa [#allocation4], 1

</llo_original>
